<compile_context>
chip_gen: v7x
topology: tpu7x:2x2x1
jax: 0.10.0
libtpu: 0.0.40
codegen_flags: <defaults>
</compile_context>

<pallas_src>
import functools

import jax
import jax.numpy as jnp
from jax.experimental import pallas as pl
from jax.experimental.pallas import tpu as pltpu


def _pad_to(x, m):
    return ((x + m - 1) // m) * m


def _floor_to(x, m):
    return (x // m) * m


def _vmem_capacity_bytes():
    """Physical VMEM per TensorCore; conservative fallback if query fails."""
    try:
        info = pltpu.get_tpu_info()
        for attr in ("vmem_capacity_bytes", "vmem_size_bytes", "vmem_bytes"):
            v = getattr(info, attr, None)
            if v:
                return int(v)
    except Exception:
        pass
    return 64 * 1024 * 1024  # v7x per-TC physical VMEM (smallest of v5e/v6e/v7x)


def _fusion_kernel(sem_ref, stat_ref, w_ref, b_ref, out_ref, *, alpha):
    # Linear projection on the MXU: stat tile [tb, Kf] @ W_blk [Kf, Nf] -> f32.
    # (W_blk is W.T, replicated block-diagonally when batch rows are lane-folded.)
    projected = jnp.dot(stat_ref[...], w_ref[...],
                        preferred_element_type=jnp.float32)
    projected = projected + b_ref[...]          # bias broadcast, f32

    sem = sem_ref[...].astype(jnp.float32)
    lo = jnp.float32(0.5 - alpha)
    hi = jnp.float32(0.5 + alpha)
    low_confidence = (sem >= lo) & (sem <= hi)
    out_ref[...] = jnp.where(low_confidence, projected, sem).astype(out_ref.dtype)


def fusion_component(
    semantic_features,
    statistical_features,
    weight,
    bias,
    alpha=0.5,
    *,
    donate_semantic_features=False,
):
    """JAX/Pallas equivalent of FusionComponent.forward.

    semantic_features:    [B, semantic_dim]
    statistical_features: [B, statistical_dim]
    weight: [semantic_dim, statistical_dim]  (PyTorch nn.Linear layout)
    bias:   [semantic_dim]
    """
    if alpha == 0:
        return semantic_features

    B, semantic_dim = semantic_features.shape
    _, statistical_dim = statistical_features.shape
    feat_dtype = semantic_features.dtype
    feat_itemsize = jnp.dtype(feat_dtype).itemsize
    stat_itemsize = jnp.dtype(statistical_features.dtype).itemsize

    # ---- Lane folding: pack `fold` batch rows into the lane axis when the
    # semantic width is lane-sparse, so loads/selects/stores are 128-lane dense.
    fold = 1
    if semantic_dim < 128 and 128 % semantic_dim == 0:
        f = 128 // semantic_dim
        while f > 1 and (B % f != 0):
            f //= 2
        fold = f

    B_eff = B // fold
    sem_w = fold * semantic_dim
    stat_w = fold * statistical_dim

    sem_in = semantic_features.reshape(B_eff, sem_w)
    stat_in = statistical_features.reshape(B_eff, stat_w)

    # ---- Weight: pre-transpose once to canonical [K, N]; block-diag replicate
    # for the folded layout; match the feature dtype (bf16 features -> bf16 W).
    mat_dtype = statistical_features.dtype
    w_t = jnp.transpose(weight).astype(jnp.float32)           # [K, N]
    if fold > 1:
        w_blk = jnp.kron(jnp.eye(fold, dtype=jnp.float32), w_t)  # [fold*K, fold*N]
        b_blk = jnp.tile(bias.astype(jnp.float32), fold)
    else:
        w_blk = w_t
        b_blk = bias.astype(jnp.float32)
    w_blk = w_blk.astype(mat_dtype)
    b_blk = b_blk.reshape(1, sem_w)

    # ---- VMEM-aware batch-tile selection (lane-padded, double-buffered).
    sem_w_pad = _pad_to(sem_w, 128)
    stat_w_pad = _pad_to(stat_w, 128)
    # HBM / VMEM bytes per folded row: sem in + out (feat dtype) + stat in.
    bytes_per_row = 2 * sem_w_pad * feat_itemsize + stat_w_pad * stat_itemsize
    vmem_per_row = 2 * bytes_per_row                      # double-buffered pipeline
    w_vmem = 2 * _pad_to(stat_w, 8) * _pad_to(sem_w, 128) * jnp.dtype(mat_dtype).itemsize
    b_vmem = 2 * 8 * _pad_to(sem_w, 128) * 4

    vmem_cap = _vmem_capacity_bytes()
    tile_budget = max(vmem_per_row * 8, int(vmem_cap * 0.45) - w_vmem - b_vmem)
    tb_vmem = max(8, _floor_to(tile_budget // vmem_per_row, 8))

    if B_eff <= 8:
        tb = B_eff                                   # single full block
    else:
        # Guarantee enough grid steps for pipelining and v7x megacore split.
        if B_eff >= 64:
            min_steps = 4
        elif B_eff >= 16:
            min_steps = 2
        else:
            min_steps = 1
        cap_steps = max(8, _floor_to(B_eff // min_steps, 8))
        tb = min(tb_vmem, cap_steps)

    grid = (pl.cdiv(B_eff, tb),)

    kernel = functools.partial(_fusion_kernel, alpha=float(alpha))

    cost = pl.CostEstimate(
        flops=int(2 * B_eff * stat_w * sem_w),
        transcendentals=0,
        bytes_accessed=int(
            B * (2 * semantic_dim * feat_itemsize + statistical_dim * stat_itemsize)
            + w_blk.size * jnp.dtype(mat_dtype).itemsize
            + b_blk.size * 4
        ),
    )

    vmem_limit = int(min(vmem_cap * 0.6, vmem_cap - (4 << 20)))

    out = pl.pallas_call(
        kernel,
        out_shape=jax.ShapeDtypeStruct((B_eff, sem_w), feat_dtype),
        grid=grid,
        in_specs=[
            # Batch-tiled feature inputs (double-buffered across the grid).
            pl.BlockSpec((tb, sem_w), lambda i: (i, 0)),
            pl.BlockSpec((tb, stat_w), lambda i: (i, 0)),
            # Weight / bias: same block every step -> fetched once, VMEM-resident.
            pl.BlockSpec((stat_w, sem_w), lambda i: (0, 0)),
            pl.BlockSpec((1, sem_w), lambda i: (0, 0)),
        ],
        out_specs=pl.BlockSpec((tb, sem_w), lambda i: (i, 0)),
        compiler_params=pltpu.CompilerParams(
            dimension_semantics=("parallel",),
            vmem_limit_bytes=vmem_limit,
        ),
        cost_estimate=cost,
        input_output_aliases={0: 0} if donate_semantic_features else {},
    )(sem_in, stat_in, w_blk, b_blk)

    return out.reshape(B, semantic_dim)


def _reference(semantic_features, statistical_features, weight, bias, alpha=0.5):
    if alpha == 0:
        return semantic_features
    projected = statistical_features @ weight.T + bias
    mask = (semantic_features >= 0.5 - alpha) & (semantic_features <= 0.5 + alpha)
    return jnp.where(mask, projected, semantic_features)


if __name__ == "__main__":
    key = jax.random.PRNGKey(0)
    k1, k2, k3, k4, k5, k6 = jax.random.split(key, 6)

    # Small shapes consistent with the module.
    B, semantic_dim, statistical_dim, alpha = 8, 32, 16, 0.5
    weight = jax.random.normal(k1, (semantic_dim, statistical_dim), jnp.float32) * 0.1
    bias = jax.random.normal(k2, (semantic_dim,), jnp.float32) * 0.1
    sem = jax.random.uniform(k3, (B, semantic_dim), jnp.float32)
    stat = jax.random.normal(k4, (B, statistical_dim), jnp.float32)

    out = jax.block_until_ready(
        fusion_component(sem, stat, weight, bias, alpha=alpha)
    )
    ref = _reference(sem, stat, weight, bias, alpha=alpha)
    assert out.shape == (B, semantic_dim)
    assert jnp.allclose(out, ref, atol=1e-5, rtol=1e-5)

    # Larger batch: exercises lane folding (fold=4), multi-step grid, partial tile.
    B2 = 2056
    sem2 = jax.random.uniform(k5, (B2, semantic_dim), jnp.float32)
    stat2 = jax.random.normal(k6, (B2, statistical_dim), jnp.float32)
    out2 = jax.block_until_ready(
        fusion_component(sem2, stat2, weight, bias, alpha=alpha)
    )
    ref2 = _reference(sem2, stat2, weight, bias, alpha=alpha)
    assert out2.shape == (B2, semantic_dim)
    assert jnp.allclose(out2, ref2, atol=1e-5, rtol=1e-5)

    # Wide semantic_dim (>=128): unfolded path, multi-step grid.
    sd3, st3, B3 = 192, 24, 48
    w3 = jax.random.normal(k1, (sd3, st3), jnp.float32) * 0.1
    b3 = jax.random.normal(k2, (sd3,), jnp.float32) * 0.1
    sem3 = jax.random.uniform(k3, (B3, sd3), jnp.float32)
    stat3 = jax.random.normal(k4, (B3, st3), jnp.float32)
    out3 = jax.block_until_ready(
        fusion_component(sem3, stat3, w3, b3, alpha=alpha)
    )
    ref3 = _reference(sem3, stat3, w3, b3, alpha=alpha)
    assert jnp.allclose(out3, ref3, atol=1e-5, rtol=1e-5)

    # bf16 feature path (weight auto-cast to bf16, f32 accumulation).
    semb = sem2.astype(jnp.bfloat16)
    statb = stat2.astype(jnp.bfloat16)
    outb = jax.block_until_ready(
        fusion_component(semb, statb, weight, bias, alpha=alpha)
    )
    refb = _reference(
        semb.astype(jnp.float32), statb.astype(jnp.float32), weight, bias, alpha=alpha
    )
    assert outb.dtype == jnp.bfloat16
    assert jnp.allclose(outb.astype(jnp.float32), refb, atol=5e-2, rtol=5e-2)

    # alpha == 0 short-circuit mirrors the PyTorch module.
    out0 = fusion_component(sem, stat, weight, bias, alpha=0.0)
    assert jnp.array_equal(out0, sem)

    print("KERNEL_OK")
</pallas_src>

<mosaic_0001>
module attributes {stable_mosaic.version = 11 : i64} {
  func.func @_fusion_kernel(%arg0: i32, %arg1: memref<2x128xf32, #tpu.memory_space<vmem>>, %arg2: memref<2x64xf32, #tpu.memory_space<vmem>>, %arg3: memref<64x128xf32, #tpu.memory_space<vmem>>, %arg4: memref<1x128xf32, #tpu.memory_space<vmem>>, %arg5: memref<2x128xf32, #tpu.memory_space<vmem>>) attributes {dimension_semantics = [#tpu.dimension_semantics<parallel>], iteration_bounds = array<i64: 1>, scalar_prefetch = 0 : i64, scratch_operands = 0 : i64, tpu.core_type = #tpu.core_type<tc>, window_params = [{transform_indices = @transform_0, window_bounds = array<i64: 2, 128>}, {transform_indices = @transform_1, window_bounds = array<i64: 2, 64>}, {pipeline_mode = #tpu.pipeline_mode<synchronous>, transform_indices = @transform_2, window_bounds = array<i64: 64, 128>}, {pipeline_mode = #tpu.pipeline_mode<synchronous>, transform_indices = @transform_3, window_bounds = array<i64: 1, 128>}, {transform_indices = @transform_4, window_bounds = array<i64: 2, 128>}]} {
    %c0 = arith.constant 0 : index
    %c0_0 = arith.constant 0 : index
    %0 = vector.load %arg2[%c0, %c0_0] : memref<2x64xf32, #tpu.memory_space<vmem>>, vector<2x64xf32>
    %c0_1 = arith.constant 0 : index
    %c0_2 = arith.constant 0 : index
    %1 = vector.load %arg3[%c0_1, %c0_2] : memref<64x128xf32, #tpu.memory_space<vmem>>, vector<64x128xf32>
    %cst = arith.constant dense<0.000000e+00> : vector<2x128xf32>
    %2 = tpu.matmul %0, %1, %cst {dimension_numbers = #tpu.dot_dimension_numbers<[1], [0], [0], [1], [0, 0, 1, 1], [], []>} : vector<2x64xf32>, vector<64x128xf32>, vector<2x128xf32> -> vector<2x128xf32>
    %c0_3 = arith.constant 0 : index
    %c0_4 = arith.constant 0 : index
    %3 = vector.load %arg4[%c0_3, %c0_4] : memref<1x128xf32, #tpu.memory_space<vmem>>, vector<1x128xf32>
    %4 = vector.broadcast %3 : vector<1x128xf32> to vector<2x128xf32>
    %5 = arith.addf %2, %4 : vector<2x128xf32>
    %c0_5 = arith.constant 0 : index
    %c0_6 = arith.constant 0 : index
    %6 = vector.load %arg1[%c0_5, %c0_6] : memref<2x128xf32, #tpu.memory_space<vmem>>, vector<2x128xf32>
    %cst_7 = arith.constant 0.000000e+00 : f32
    %7 = vector.broadcast %cst_7 : f32 to vector<2x128xf32>
    %8 = arith.cmpf oge, %6, %7 : vector<2x128xf32>
    %cst_8 = arith.constant 1.000000e+00 : f32
    %9 = vector.broadcast %cst_8 : f32 to vector<2x128xf32>
    %10 = arith.cmpf ole, %6, %9 : vector<2x128xf32>
    %11 = arith.andi %8, %10 : vector<2x128xi1>
    %12 = arith.select %11, %5, %6 : vector<2x128xi1>, vector<2x128xf32>
    %c0_9 = arith.constant 0 : index
    %c0_10 = arith.constant 0 : index
    %13 = vector.load %arg5[%c0_9, %c0_10] : memref<2x128xf32, #tpu.memory_space<vmem>>, vector<2x128xf32>
    tpu.vector_store %arg5[%c0_9, %c0_10], %12 {strides = array<i32>} : memref<2x128xf32, #tpu.memory_space<vmem>>, vector<2x128xf32>,
    return
  }
  func.func @transform_0(%arg0: i32) -> (i32, i32) {
    %c0_i32 = arith.constant 0 : i32
    %c0_i32_0 = arith.constant 0 : i32
    return %arg0, %c0_i32 : i32, i32
  }
  func.func @transform_1(%arg0: i32) -> (i32, i32) {
    %c0_i32 = arith.constant 0 : i32
    %c0_i32_0 = arith.constant 0 : i32
    return %arg0, %c0_i32 : i32, i32
  }
  func.func @transform_2(%arg0: i32) -> (i32, i32) {
    %c0_i32 = arith.constant 0 : i32
    %c0_i32_0 = arith.constant 0 : i32
    %c0_i32_1 = arith.constant 0 : i32
    return %c0_i32, %c0_i32_0 : i32, i32
  }
  func.func @transform_3(%arg0: i32) -> (i32, i32) {
    %c0_i32 = arith.constant 0 : i32
    %c0_i32_0 = arith.constant 0 : i32
    %c0_i32_1 = arith.constant 0 : i32
    return %c0_i32, %c0_i32_0 : i32, i32
  }
  func.func @transform_4(%arg0: i32) -> (i32, i32) {
    %c0_i32 = arith.constant 0 : i32
    %c0_i32_0 = arith.constant 0 : i32
    return %arg0, %c0_i32 : i32, i32
  }
}

</mosaic_0001>

<llo_original>
// kernel: tpu_custom_call.1
$region0: #{tpu_custom_call.1}
  #allocation0 [shape = 'u32[]', space=smem, size = 0x4, offset = 0x4, fixed_abs, tag = 'smem constant byte address 0x4 - core index']
  #allocation1 [shape = 'u32[144,128]{1,0:T(1,128)}', space=vmem, size = 0x12000, scoped, tag = 'internal scratch']
  %s0 = inlined_call_operand.hbm [shape: f32[2,128], index: 0, kind: input, shape index: {}]
  %s1 = inlined_call_operand.vmem [shape: f32[2,64], index: 1, kind: input, shape index: {}]
  %s2 = inlined_call_operand.hbm [shape: f32[64,128], index: 2, kind: input, shape index: {}]
  %s3 = inlined_call_operand.vmem [shape: f32[1,128], index: 3, kind: input, shape index: {}]
  %s4 = inlined_call_operand.hbm [shape: f32[2,128], index: 4, kind: output, shape index: {}]
  %s5 = sld [smem:[#allocation0]]
  $region34: #{tpu_custom_call.1} parent=0
    _
  %s7 = ssub.s32 1, %s5
  %s8 = scalar_select 0, %s7, %s5
  $region1: #{tpu_custom_call.1} parent=0
    #allocation2 [shape = 'u8[1024]{0}', space=vmem, size = 0x400, scoped, tag = 'input window, operand 0, single buffered']
    #allocation3 [shape = 's32[1]{0}', space=sflag, size = 0x4, scoped, tag = 'scoped memory for tpu_custom_call.1']
    #allocation4 [shape = 's32[1]{0}', space=sflag, size = 0x4, scoped, tag = 'scoped memory for tpu_custom_call.1']
    #allocation5 [shape = 'u8[32768]{0}', space=vmem, size = 0x8000, scoped, tag = 'input window, operand 2, single buffered']
    #allocation6 [shape = 's32[1]{0}', space=sflag, size = 0x4, scoped, tag = 'scoped memory for tpu_custom_call.1']
    #allocation7 [shape = 'u8[1024]{0}', space=vmem, size = 0x400, scoped, tag = 'output window, operand 0, single buffered']
    %9 = vsyncpa [#allocation3], 0
    %10 = vsyncpa [#allocation6], 0
    %11 = vsyncpa [#allocation4], 0
    // Predicated region
    $region2: #{tpu_custom_call.1} parent=1 // pred_check
      _
    $region3: #{tpu_custom_call.1} parent=1 // pred_check_branch
      %13 = sbr.rel (0) target = $region5
    $region4: #{tpu_custom_call.1} parent=1 // pred_region
      %s15 = ssub.s32 32, 32
      %16 = vsyncadd [#allocation3], %s15
      %s18 = sshll.u32 [#allocation2], 4
      %s19 = int_to_ptr.vmem [resolvable:$true] %s18
      %21 = dma.hbm_to_vmem [thread:$0]  %s0, 32, %s19, [#allocation3]
    $region5: #{tpu_custom_call.1} parent=1 // pred_fallthru
      _
    // Predicated region
    $region6: #{tpu_custom_call.1} parent=1 // pred_check
      _
    $region7: #{tpu_custom_call.1} parent=1 // pred_check_branch
      %23 = sbr.rel (0) target = $region9
    $region8: #{tpu_custom_call.1} parent=1 // pred_region
      _
    $region9: #{tpu_custom_call.1} parent=1 // pred_fallthru
      _
    // Predicated region
    $region10: #{tpu_custom_call.1} parent=1 // pred_check
      _
    $region11: #{tpu_custom_call.1} parent=1 // pred_check_branch
      %25 = sbr.rel (0) target = $region13
    $region12: #{tpu_custom_call.1} parent=1 // pred_region
      %s27 = ssub.s32 1024, 1024
      %28 = vsyncadd [#allocation6], %s27
      %s29 = sshll.u32 [#allocation5], 4
      %s30 = int_to_ptr.vmem [resolvable:$true] %s29
      %35 = dma.hbm_to_vmem [thread:$0]  %s2, 1024, %s30, [#allocation6], 128, 128, 8
    $region13: #{tpu_custom_call.1} parent=1 // pred_fallthru
      _
    // Predicated region
    $region14: #{tpu_custom_call.1} parent=1 // pred_check
      _
    $region15: #{tpu_custom_call.1} parent=1 // pred_check_branch
      %37 = sbr.rel (0) target = $region17
    $region16: #{tpu_custom_call.1} parent=1 // pred_region
      _
    $region17: #{tpu_custom_call.1} parent=1 // pred_fallthru
      _
    // Predicated region
    $region18: #{tpu_custom_call.1} parent=1 // pred_check
      _
    $region19: #{tpu_custom_call.1} parent=1 // pred_check_branch
      %39 = sbr.rel (0) target = $region21
    $region20: #{tpu_custom_call.1} parent=1 // pred_region
      %40 = dma.done [#allocation3], 32
    $region21: #{tpu_custom_call.1} parent=1 // pred_fallthru
      _
    // Predicated region
    $region22: #{tpu_custom_call.1} parent=1 // pred_check
      _
    $region23: #{tpu_custom_call.1} parent=1 // pred_check_branch
      %42 = sbr.rel (0) target = $region25
    $region24: #{tpu_custom_call.1} parent=1 // pred_region
      %43 = dma.done [#allocation6], 1024
    $region25: #{tpu_custom_call.1} parent=1 // pred_fallthru
      _
    %v44 = vld [vmem:[%s1] sm:$0x3]
    %v45 = vld [vmem:[#allocation5] sm:$0xff]
    %v46 = vld [vmem:[#allocation5 + $0x8] sm:$0xff]
    %v47 = vld [vmem:[#allocation5 + $0x10] sm:$0xff]
    %v48 = vld [vmem:[#allocation5 + $0x18] sm:$0xff]
    %v49 = vld [vmem:[#allocation5 + $0x20] sm:$0xff]
    %v50 = vld [vmem:[#allocation5 + $0x28] sm:$0xff]
    %v51 = vld [vmem:[#allocation5 + $0x30] sm:$0xff]
    %v52 = vld [vmem:[#allocation5 + $0x38] sm:$0xff]
    %v53 = vld [vmem:[%s3] sm:$0x1]
    %v55 = vlaneseq
    %v56 = vshrl.u32 %v55, 7
    %v57 = vsub.s32 0, %v56
    %v58 = vrot.slane %v53, %v57
    %vm60 = vcmask 523264
    %v62 = vsel %vm60, %v44, 0
    %64 = vmatprep.subr.mxu0 0.0
    %65 = vmatpush1.msra.mxu0 %v45
    %66 = vmatprep.subr.mxu0 0.0
    %67 = vmatpush1.msra.mxu0 %v46
    %68 = vmatprep.subr.mxu0 0.0
    %69 = vmatpush1.msra.mxu0 %v47
    %70 = vmatprep.subr.mxu0 0.0
    %71 = vmatpush1.msra.mxu0 %v48
    %72 = vmatprep.subr.mxu0 0.0
    %73 = vmatpush1.msra.mxu0 %v49
    %74 = vmatprep.subr.mxu0 0.0
    %75 = vmatpush1.msra.mxu0 %v50
    %76 = vmatprep.subr.mxu0 0.0
    %77 = vmatpush1.msra.mxu0 %v51
    %78 = vmatprep.subr.mxu0 0.0
    %79 = vmatpush1.msra.mxu0 %v52
    %80 = vmatprep.subr.mxu0 0.0
    %81 = vmatpush1.msra.mxu0 0.0
    %82 = vmatprep.subr.mxu0 0.0
    %83 = vmatpush1.msra.mxu0 0.0
    %84 = vmatprep.subr.mxu0 0.0
    %85 = vmatpush1.msra.mxu0 0.0
    %86 = vmatprep.subr.mxu0 0.0
    %87 = vmatpush1.msra.mxu0 0.0
    %88 = vmatprep.subr.mxu0 0.0
    %89 = vmatpush1.msra.mxu0 0.0
    %90 = vmatprep.subr.mxu0 0.0
    %91 = vmatpush1.msra.mxu0 0.0
    %92 = vmatprep.subr.mxu0 0.0
    %93 = vmatpush1.msra.mxu0 0.0
    %94 = vmatprep.subr.mxu0 0.0
    %95 = vmatpush1.msra.mxu0 0.0
    %96 = vmatprep.subr.mxu0 0.0
    %97 = vmatpush1.msra.mxu0 0.0
    %98 = vmatprep.subr.mxu0 0.0
    %99 = vmatpush1.msra.mxu0 0.0
    %100 = vmatprep.subr.mxu0 0.0
    %101 = vmatpush1.msra.mxu0 0.0
    %102 = vmatprep.subr.mxu0 0.0
    %103 = vmatpush1.msra.mxu0 0.0
    %104 = vmatprep.subr.mxu0 0.0
    %105 = vmatpush1.msra.mxu0 0.0
    %106 = vmatprep.subr.mxu0 0.0
    %107 = vmatpush1.msra.mxu0 0.0
    %108 = vmatprep.subr.mxu0 0.0
    %109 = vmatpush1.msra.mxu0 0.0
    %110 = vmatprep.subr.mxu0 0.0
    %111 = vmatpush1.msra.mxu0 0.0
    %112 = vmatprep.subr.mxu0 0.0
    %113 = vmatpush1.msra.mxu0 0.0
    %114 = vmatprep.subr.mxu0 0.0
    %115 = vmatpush1.msra.mxu0 0.0
    %116 = vmatprep.subr.mxu0 0.0
    %117 = vmatpush1.msra.mxu0 0.0
    %118 = vmatprep.subr.mxu0 0.0
    %119 = vmatpush1.msra.mxu0 0.0
    %120 = vmatprep.subr.mxu0 0.0
    %121 = vmatpush1.msra.mxu0 0.0
    %122 = vmatprep.subr.mxu0 0.0
    %123 = vmatpush1.msra.mxu0 0.0
    %124 = vmatprep.subr.mxu0 0.0
    %125 = vmatpush1.msra.mxu0 0.0
    %126 = vmatprep.subr.mxu0 0.0
    %127 = vmatpush1.msra.mxu0 0.0
    %128 = vmatprep.mubr.f32.mxu0 0.0
    %129 = vmatmul.mubr.f32.gmra.mrb[0].mxu0 %v62
    %v130 = vpop.f32.mrb[0].mxu0
    %v131 = vadd.f32 %v58, %v130
    %v132 = vpop.f32.mrb[0].mxu0
    %133 = vdwg.mxu0
    %v134 = vld [vmem:[#allocation2] sm:$0x3]
    %vm135 = vcmp.ge.f32.partialorder %v134, 0.0
    %vm136 = vcmp.le.f32.partialorder %v134, 1.0
    %vm137 = vmand %vm135, %vm136
    %v138 = vsel %vm137, %v131, %v134
    %139 = vst [vmem:[#allocation7] sm:$0x3] %v138
    // Predicated region
    $region26: #{tpu_custom_call.1} parent=1 // pred_check
      _
    $region27: #{tpu_custom_call.1} parent=1 // pred_check_branch
      %141 = sbr.rel (0) target = $region29
    $region28: #{tpu_custom_call.1} parent=1 // pred_region
      %s143 = ssub.s32 32, 32
      %144 = vsyncadd [#allocation4], %s143
      %s146 = sshll.u32 [#allocation7], 4
      %s147 = int_to_ptr.vmem [resolvable:$true] %s146
      %149 = dma.vmem_to_hbm [thread:$0]  %s147, 32, %s4, [#allocation4]
    $region29: #{tpu_custom_call.1} parent=1 // pred_fallthru
      _
    // Predicated region
    $region30: #{tpu_custom_call.1} parent=1 // pred_check
      _
    $region31: #{tpu_custom_call.1} parent=1 // pred_check_branch
      %151 = sbr.rel (0) target = $region33
    $region32: #{tpu_custom_call.1} parent=1 // pred_region
      %152 = dma.done [#allocation4], 32
    $region33: #{tpu_custom_call.1} parent=1 // pred_fallthru
      _
    %153 = vsyncpa [#allocation3], 1
    %154 = vsyncpa [#allocation6], 1
    %155 = vsyncpa [#allocation4], 1

</llo_original>
